<compile_context>
chip_gen: v7x
topology: tpu7x:2x2x1
jax: 0.10.0
libtpu: 0.0.40
codegen_flags: <defaults>
</compile_context>

<pallas_src>
import functools

import jax
import jax.numpy as jnp
import numpy as np
from jax.experimental import pallas as pl
from jax.experimental.pallas import tpu as pltpu


def _nce_aue_kernel(ymin_ref, pred_ref, lab_ref, nce_ref, aue_ref, *,
                    a, q, hw, tn, tps, num_tiles, mask_needed):
    s = pl.program_id(0)                     # pixel-split axis (megacore)
    t = pl.program_id(2)                     # pixel-tile axis within the split
    g = s * tps + t                          # global pixel-tile index (unclamped)

    @pl.when(t == 0)
    def _():
        nce_ref[...] = jnp.zeros_like(nce_ref)
        aue_ref[...] = jnp.zeros_like(aue_ref)

    x = pred_ref[0].astype(jnp.float32)      # (C, TN) logits, classes on sublanes
    lab = lab_ref[0]                         # (1, TN) int32 class ids
    # 255 -> min(labels) fixup (matches the PyTorch in-place assignment)
    lab = jnp.where(lab == 255, ymin_ref[0], lab)

    # numerically stable softmax over the class (sublane) axis
    m = jnp.max(x, axis=0, keepdims=True)    # (1, TN)
    e = jnp.exp(x - m)                       # (C, TN)  (EUP)
    ssum = jnp.sum(e, axis=0, keepdims=True)  # (1, TN), in [1, C]

    # true-class exponent via iota compare; softmax probs never materialized
    cls = jax.lax.broadcasted_iota(jnp.int32, x.shape, 0)
    e_y = jnp.sum(jnp.where(cls == lab, e, 0.0), axis=0, keepdims=True)  # (1, TN)

    # EUP approximate reciprocal + one Newton step (~1e-8 rel. error)
    inv0 = pl.reciprocal(ssum, approx=True)
    inv_s = inv0 * (2.0 - ssum * inv0)
    p_y = e_y * inv_s                        # softmax prob of the true class
    nce_pix = p_y                            # == -p_y / -sum(p), sum(p) == 1

    # AUE: clip is monotone and one-hot selects one entry, so clip(p)_y == clip(p_y)
    p_y_cl = jnp.clip(p_y, 1e-7, 1.0)
    tt = a - p_y_cl
    if abs(q - 1.5) < 1e-12:
        pow_t = tt * jnp.sqrt(tt)            # x**1.5 without the exp/log pair
    else:
        pow_t = jnp.power(tt, q)
    aue_pix = (pow_t - (a - 1.0) ** q) * (1.0 / q)

    def accum(nv, av):
        nce_ref[...] += nv.reshape(nce_ref.shape)
        aue_ref[...] += av.reshape(aue_ref.shape)

    if mask_needed:
        # Only the last real tile (ragged) and fully-padded tiles need masking;
        # keep the hot loop branch- and mask-free.
        boundary = num_tiles - 1

        @pl.when(g < boundary)
        def _():
            accum(nce_pix, aue_pix)

        @pl.when(g >= boundary)
        def _():
            col = g * tn + jax.lax.broadcasted_iota(jnp.int32, (1, tn), 1)
            valid = col < hw
            accum(jnp.where(valid, nce_pix, 0.0),
                  jnp.where(valid, aue_pix, 0.0))
    else:
        accum(nce_pix, aue_pix)


def _vmem_capacity_bytes():
    try:
        info = pltpu.get_tpu_info()
        cap = getattr(info, "vmem_capacity_bytes", None)
        if cap:
            return int(cap)
    except Exception:
        pass
    return 64 * 1024 * 1024   # conservative fallback (v7x per-TC VMEM)


def nce_and_aue_loss(pred_nchw, labels, *, alpha=0.5, beta=1.0, a=6.0, q=1.5,
                     tn=None, label_min=None):
    """NCEandAUE forward.

    pred_nchw: (N, C, H, W) float logits (f32 or bf16; upcast in-kernel).
    labels:    (N, H, W) integer class map (may contain 255).
    label_min: optional known min label (e.g. 0) to skip the extra HBM pass.
    """
    N, C, H, W = pred_nchw.shape
    HW = H * W
    M = N * HW

    hw_rounded = ((HW + 127) // 128) * 128
    logit_bytes = jnp.dtype(pred_nchw.dtype).itemsize

    # Generation-aware pixel-tile width (lane axis), multiple of 128.
    vmem_cap = _vmem_capacity_bytes()
    budget = min(vmem_cap // 2, 48 * 1024 * 1024)
    # bytes per lane column of pipeline state:
    #   logits (x2 buffers) + int32 labels (x2) + two resident f32 accumulators (x2 headroom)
    per_lane = 2 * C * logit_bytes + 2 * 4 + 2 * 2 * 4
    cap_tn = max(128, (budget // per_lane) // 128 * 128)
    soft_cap = 32768 if tn is None else max(128, (int(tn) // 128) * 128)
    tn = max(128, min(hw_rounded, soft_cap, cap_tn))

    num_tiles = (HW + tn - 1) // tn

    # Megacore: when N == 1 the batch axis can't shard across TensorCores,
    # so split the pixel-tile axis into a leading parallel axis of size 2.
    num_splits = 2 if (N == 1 and num_tiles >= 2) else 1
    tps = (num_tiles + num_splits - 1) // num_splits
    has_pad_tiles = num_splits * tps > num_tiles
    mask_needed = (HW % tn != 0) or has_pad_tiles

    # free reshapes only -- no transpose, no pad, no mask, no dtype cast in HBM
    pred3 = pred_nchw.reshape(N, C, HW)
    lab3 = labels.astype(jnp.int32).reshape(N, 1, HW)
    if label_min is None:
        y_min = jnp.min(labels).astype(jnp.int32).reshape((1,))
    else:
        y_min = jnp.asarray(label_min, dtype=jnp.int32).reshape((1,))

    last = num_tiles - 1
    if has_pad_tiles:
        def tile_idx(s, t):
            return jnp.minimum(s * tps + t, last)   # padded tiles re-read last tile, fully masked
    else:
        def tile_idx(s, t):
            return s * tps + t

    kernel = functools.partial(_nce_aue_kernel, a=float(a), q=float(q),
                               hw=HW, tn=tn, tps=tps, num_tiles=num_tiles,
                               mask_needed=mask_needed)

    needed = per_lane * tn
    vmem_limit = int(min(max(needed + (16 << 20), 32 << 20),
                         max(vmem_cap - (8 << 20), 32 << 20)))

    nce_part, aue_part = pl.pallas_call(
        kernel,
        out_shape=(jax.ShapeDtypeStruct((num_splits, N, 1, tn), jnp.float32),
                   jax.ShapeDtypeStruct((num_splits, N, 1, tn), jnp.float32)),
        grid_spec=pltpu.PrefetchScalarGridSpec(
            num_scalar_prefetch=1,
            grid=(num_splits, N, tps),
            in_specs=[
                # NOTE: pipeline_mode=pl.Buffered(3) on the logits spec is an
                # option if profiling shows exposed strided-row DMA at small C.
                pl.BlockSpec((1, C, tn),
                             lambda s, n, t, ymin: (n, 0, tile_idx(s, t))),
                pl.BlockSpec((1, 1, tn),
                             lambda s, n, t, ymin: (n, 0, tile_idx(s, t))),
            ],
            out_specs=(
                pl.BlockSpec((1, 1, 1, tn), lambda s, n, t, ymin: (s, n, 0, 0)),
                pl.BlockSpec((1, 1, 1, tn), lambda s, n, t, ymin: (s, n, 0, 0)),
            ),
        ),
        compiler_params=pltpu.CompilerParams(
            dimension_semantics=("parallel", "parallel", "arbitrary"),
            vmem_limit_bytes=vmem_limit),
    )(y_min, pred3, lab3)

    nce = alpha * (jnp.sum(nce_part) / M)
    aue = beta * (jnp.sum(aue_part) / M)
    return nce + aue


def _reference_loss(pred, labels, *, alpha, beta, a, q):
    """Pure-JAX reference mirroring the PyTorch forward exactly."""
    y_min = jnp.min(labels)
    lab = jnp.where(labels == 255, y_min, labels)
    p = jax.nn.softmax(pred.astype(jnp.float32), axis=1)
    onehot = jax.nn.one_hot(lab, pred.shape[1], axis=1, dtype=jnp.float32)
    p_y = jnp.sum(onehot * p, axis=1)
    nce = alpha * jnp.mean((-1.0 * p_y) / (-jnp.sum(p, axis=1)))
    pc = jnp.clip(p, 1e-7, 1.0)
    p_yc = jnp.sum(onehot * pc, axis=1)
    aue = beta * jnp.mean((jnp.power(a - p_yc, q) - (a - 1.0) ** q) / q)
    return nce + aue


if __name__ == "__main__":
    # NCEandAUE(alpha=0.5, beta=1.0, a=6, q=1.5) -- no learnable parameters.
    key = jax.random.PRNGKey(0)

    # --- test 1: small NCHW batch, single pixel tile, no split ---
    N, C, H, W = 2, 4, 16, 16
    kp, kl, key = jax.random.split(key, 3)
    pred = jax.random.normal(kp, (N, C, H, W), dtype=jnp.float32)
    labels = jax.random.randint(kl, (N, H, W), 0, C, dtype=jnp.int32)
    labels = labels.at[0, 0, 0].set(255).at[1, 5, 7].set(255)  # exercise fixup

    out = nce_and_aue_loss(pred, labels, alpha=0.5, beta=1.0, a=6.0, q=1.5)
    out = jax.block_until_ready(out)
    ref = _reference_loss(pred, labels, alpha=0.5, beta=1.0, a=6.0, q=1.5)
    np.testing.assert_allclose(np.asarray(out), np.asarray(ref),
                               rtol=2e-5, atol=1e-6)

    # --- test 2: N == 1, forced small tile -> megacore split, ragged tail,
    #             padded tile path ---
    N2, C2, H2, W2 = 1, 5, 10, 27       # HW = 270 (not a multiple of 128)
    kp2, kl2 = jax.random.split(key)
    pred2 = jax.random.normal(kp2, (N2, C2, H2, W2), dtype=jnp.float32)
    labels2 = jax.random.randint(kl2, (N2, H2, W2), 0, C2, dtype=jnp.int32)
    labels2 = labels2.at[0, 3, 11].set(255)

    out2 = nce_and_aue_loss(pred2, labels2, alpha=0.5, beta=1.0, a=6.0, q=1.5,
                            tn=128)
    out2 = jax.block_until_ready(out2)
    ref2 = _reference_loss(pred2, labels2, alpha=0.5, beta=1.0, a=6.0, q=1.5)
    np.testing.assert_allclose(np.asarray(out2), np.asarray(ref2),
                               rtol=2e-5, atol=1e-6)

    print("KERNEL_OK")
</pallas_src>

<mosaic_0001>
module attributes {stable_mosaic.version = 11 : i64} {
  func.func @_nce_aue_kernel(%arg0: i32, %arg1: i32, %arg2: i32, %arg3: memref<1xi32, #tpu.memory_space<smem>>, %arg4: memref<1x4x256xf32, #tpu.memory_space<vmem>>, %arg5: memref<1x1x256xi32, #tpu.memory_space<vmem>>, %arg6: memref<1x1x1x256xf32, #tpu.memory_space<vmem>>, %arg7: memref<1x1x1x256xf32, #tpu.memory_space<vmem>>) attributes {dimension_semantics = [#tpu.dimension_semantics<parallel>, #tpu.dimension_semantics<parallel>, #tpu.dimension_semantics<arbitrary>], iteration_bounds = array<i64: 1, 2, 1>, scalar_prefetch = 1 : i64, scratch_operands = 0 : i64, tpu.core_type = #tpu.core_type<tc>, window_params = [{transform_indices = @transform_0, window_bounds = array<i64: 1, 4, 256>}, {transform_indices = @transform_1, window_bounds = array<i64: 1, 1, 256>}, {transform_indices = @transform_2, window_bounds = array<i64: 1, 1, 1, 256>}, {transform_indices = @transform_3, window_bounds = array<i64: 1, 1, 1, 256>}]} {
    %c0_i32 = arith.constant 0 : i32
    %0 = arith.cmpi eq, %arg2, %c0_i32 : i32
    %1 = arith.extui %0 : i1 to i32
    %c0_i32_0 = arith.constant 0 : i32
    %2 = arith.cmpi ne, %1, %c0_i32_0 : i32
    scf.if %2 {
      %cst_32 = arith.constant 0.000000e+00 : f32
      %52 = vector.broadcast %cst_32 : f32 to vector<1x1x1x256xf32>
      %c0_33 = arith.constant 0 : index
      %c0_34 = arith.constant 0 : index
      %c0_35 = arith.constant 0 : index
      %c0_36 = arith.constant 0 : index
      %53 = vector.load %arg6[%c0_33, %c0_34, %c0_35, %c0_36] : memref<1x1x1x256xf32, #tpu.memory_space<vmem>>, vector<1x1x1x256xf32>
      tpu.vector_store %arg6[%c0_33, %c0_34, %c0_35, %c0_36], %52 {strides = array<i32>} : memref<1x1x1x256xf32, #tpu.memory_space<vmem>>, vector<1x1x1x256xf32>,
      %cst_37 = arith.constant 0.000000e+00 : f32
      %54 = vector.broadcast %cst_37 : f32 to vector<1x1x1x256xf32>
      %c0_38 = arith.constant 0 : index
      %c0_39 = arith.constant 0 : index
      %c0_40 = arith.constant 0 : index
      %c0_41 = arith.constant 0 : index
      %55 = vector.load %arg7[%c0_38, %c0_39, %c0_40, %c0_41] : memref<1x1x1x256xf32, #tpu.memory_space<vmem>>, vector<1x1x1x256xf32>
      tpu.vector_store %arg7[%c0_38, %c0_39, %c0_40, %c0_41], %54 {strides = array<i32>} : memref<1x1x1x256xf32, #tpu.memory_space<vmem>>, vector<1x1x1x256xf32>,
    } else {
    }
    %c0 = arith.constant 0 : index
    %c0_1 = arith.constant 0 : index
    %c0_2 = arith.constant 0 : index
    %3 = vector.load %arg4[%c0, %c0_1, %c0_2] : memref<1x4x256xf32, #tpu.memory_space<vmem>>, vector<1x4x256xf32>
    %4 = vector.shape_cast %3 : vector<1x4x256xf32> to vector<4x256xf32>
    %c0_3 = arith.constant 0 : index
    %c0_4 = arith.constant 0 : index
    %c0_5 = arith.constant 0 : index
    %5 = vector.load %arg5[%c0_3, %c0_4, %c0_5] : memref<1x1x256xi32, #tpu.memory_space<vmem>>, vector<1x1x256xi32>
    %6 = vector.shape_cast %5 : vector<1x1x256xi32> to vector<1x256xi32>
    %c255_i32 = arith.constant 255 : i32
    %7 = vector.broadcast %c255_i32 : i32 to vector<1x256xi32>
    %8 = arith.cmpi eq, %6, %7 : vector<1x256xi32>
    %c0_6 = arith.constant 0 : index
    %9 = memref.load %arg3[%c0_6] : memref<1xi32, #tpu.memory_space<smem>>
    %10 = vector.broadcast %9 : i32 to vector<1x256xi32>
    %11 = arith.select %8, %10, %6 : vector<1x256xi1>, vector<1x256xi32>
    %cst = arith.constant dense<0xFF800000> : vector<256xf32>
    %12 = vector.multi_reduction <maximumf>, %4, %cst [0] : vector<4x256xf32> to vector<256xf32>
    %13 = vector.shape_cast %12 : vector<256xf32> to vector<1x256xf32>
    %14 = vector.broadcast %13 : vector<1x256xf32> to vector<4x256xf32>
    %15 = arith.subf %4, %14 : vector<4x256xf32>
    %16 = math.exp %15 : vector<4x256xf32>
    %cst_7 = arith.constant dense<0.000000e+00> : vector<256xf32>
    %17 = vector.multi_reduction <add>, %16, %cst_7 [0] : vector<4x256xf32> to vector<256xf32>
    %18 = vector.shape_cast %17 : vector<256xf32> to vector<1x256xf32>
    %19 = tpu.iota {dimensions = array<i32: 0>} : vector<4x256xi32>
    %20 = vector.broadcast %11 : vector<1x256xi32> to vector<4x256xi32>
    %21 = arith.cmpi eq, %19, %20 : vector<4x256xi32>
    %cst_8 = arith.constant 0.000000e+00 : f32
    %22 = vector.broadcast %cst_8 : f32 to vector<4x256xf32>
    %23 = arith.select %21, %16, %22 : vector<4x256xi1>, vector<4x256xf32>
    %cst_9 = arith.constant dense<0.000000e+00> : vector<256xf32>
    %24 = vector.multi_reduction <add>, %23, %cst_9 [0] : vector<4x256xf32> to vector<256xf32>
    %25 = vector.shape_cast %24 : vector<256xf32> to vector<1x256xf32>
    %26 = tpu.reciprocal %18 {approx = true} : vector<1x256xf32> -> vector<1x256xf32>
    %27 = arith.mulf %18, %26 : vector<1x256xf32>
    %cst_10 = arith.constant 2.000000e+00 : f32
    %28 = vector.broadcast %cst_10 : f32 to vector<1x256xf32>
    %29 = arith.subf %28, %27 : vector<1x256xf32>
    %30 = arith.mulf %26, %29 : vector<1x256xf32>
    %31 = arith.mulf %25, %30 : vector<1x256xf32>
    %cst_11 = arith.constant 1.000000e-07 : f32
    %cst_12 = arith.constant 1.000000e+00 : f32
    %32 = vector.broadcast %cst_11 : f32 to vector<1x256xf32>
    %33 = arith.maximumf %32, %31 : vector<1x256xf32>
    %34 = vector.broadcast %cst_12 : f32 to vector<1x256xf32>
    %35 = arith.minimumf %34, %33 : vector<1x256xf32>
    %cst_13 = arith.constant 6.000000e+00 : f32
    %36 = vector.broadcast %cst_13 : f32 to vector<1x256xf32>
    %37 = arith.subf %36, %35 : vector<1x256xf32>
    %38 = math.sqrt %37 : vector<1x256xf32>
    %39 = arith.mulf %37, %38 : vector<1x256xf32>
    %cst_14 = arith.constant 11.1803398 : f32
    %40 = vector.broadcast %cst_14 : f32 to vector<1x256xf32>
    %41 = arith.subf %39, %40 : vector<1x256xf32>
    %cst_15 = arith.constant 0.666666686 : f32
    %42 = vector.broadcast %cst_15 : f32 to vector<1x256xf32>
    %43 = arith.mulf %41, %42 : vector<1x256xf32>
    %c0_16 = arith.constant 0 : index
    %c0_17 = arith.constant 0 : index
    %c0_18 = arith.constant 0 : index
    %c0_19 = arith.constant 0 : index
    %44 = vector.load %arg6[%c0_16, %c0_17, %c0_18, %c0_19] : memref<1x1x1x256xf32, #tpu.memory_space<vmem>>, vector<1x1x1x256xf32>
    %45 = vector.shape_cast %31 : vector<1x256xf32> to vector<1x1x1x256xf32>
    %46 = arith.addf %44, %45 : vector<1x1x1x256xf32>
    %c0_20 = arith.constant 0 : index
    %c0_21 = arith.constant 0 : index
    %c0_22 = arith.constant 0 : index
    %c0_23 = arith.constant 0 : index
    %47 = vector.load %arg6[%c0_20, %c0_21, %c0_22, %c0_23] : memref<1x1x1x256xf32, #tpu.memory_space<vmem>>, vector<1x1x1x256xf32>
    tpu.vector_store %arg6[%c0_20, %c0_21, %c0_22, %c0_23], %46 {strides = array<i32>} : memref<1x1x1x256xf32, #tpu.memory_space<vmem>>, vector<1x1x1x256xf32>,
    %c0_24 = arith.constant 0 : index
    %c0_25 = arith.constant 0 : index
    %c0_26 = arith.constant 0 : index
    %c0_27 = arith.constant 0 : index
    %48 = vector.load %arg7[%c0_24, %c0_25, %c0_26, %c0_27] : memref<1x1x1x256xf32, #tpu.memory_space<vmem>>, vector<1x1x1x256xf32>
    %49 = vector.shape_cast %43 : vector<1x256xf32> to vector<1x1x1x256xf32>
    %50 = arith.addf %48, %49 : vector<1x1x1x256xf32>
    %c0_28 = arith.constant 0 : index
    %c0_29 = arith.constant 0 : index
    %c0_30 = arith.constant 0 : index
    %c0_31 = arith.constant 0 : index
    %51 = vector.load %arg7[%c0_28, %c0_29, %c0_30, %c0_31] : memref<1x1x1x256xf32, #tpu.memory_space<vmem>>, vector<1x1x1x256xf32>
    tpu.vector_store %arg7[%c0_28, %c0_29, %c0_30, %c0_31], %50 {strides = array<i32>} : memref<1x1x1x256xf32, #tpu.memory_space<vmem>>, vector<1x1x1x256xf32>,
    return
  }
  func.func @transform_0(%arg0: i32, %arg1: i32, %arg2: i32, %arg3: memref<1xi32, #tpu.memory_space<smem>>) -> (i32, i32, i32) {
    %c1_i32 = arith.constant 1 : i32
    %0 = arith.muli %arg0, %c1_i32 : i32
    %1 = arith.addi %0, %arg2 : i32
    %c0_i32 = arith.constant 0 : i32
    %c0_i32_0 = arith.constant 0 : i32
    return %arg1, %c0_i32, %1 : i32, i32, i32
  }
  func.func @transform_1(%arg0: i32, %arg1: i32, %arg2: i32, %arg3: memref<1xi32, #tpu.memory_space<smem>>) -> (i32, i32, i32) {
    %c1_i32 = arith.constant 1 : i32
    %0 = arith.muli %arg0, %c1_i32 : i32
    %1 = arith.addi %0, %arg2 : i32
    %c0_i32 = arith.constant 0 : i32
    %c0_i32_0 = arith.constant 0 : i32
    return %arg1, %c0_i32, %1 : i32, i32, i32
  }
  func.func @transform_2(%arg0: i32, %arg1: i32, %arg2: i32, %arg3: memref<1xi32, #tpu.memory_space<smem>>) -> (i32, i32, i32, i32) {
    %c0_i32 = arith.constant 0 : i32
    %c0_i32_0 = arith.constant 0 : i32
    %c0_i32_1 = arith.constant 0 : i32
    return %arg0, %arg1, %c0_i32, %c0_i32_0 : i32, i32, i32, i32
  }
  func.func @transform_3(%arg0: i32, %arg1: i32, %arg2: i32, %arg3: memref<1xi32, #tpu.memory_space<smem>>) -> (i32, i32, i32, i32) {
    %c0_i32 = arith.constant 0 : i32
    %c0_i32_0 = arith.constant 0 : i32
    %c0_i32_1 = arith.constant 0 : i32
    return %arg0, %arg1, %c0_i32, %c0_i32_0 : i32, i32, i32, i32
  }
}

</mosaic_0001>

<llo_original>
// kernel: tpu_custom_call.1
$region0: #{tpu_custom_call.1}
  #allocation0 [shape = 'u32[]', space=smem, size = 0x4, offset = 0x4, fixed_abs, tag = 'smem constant byte address 0x4 - core index']
  #allocation1 [shape = 'u32[144,128]{1,0:T(1,128)}', space=vmem, size = 0x12000, scoped, tag = 'internal scratch']
  #allocation2 [shape = 's32[1]{0}', space=sflag, size = 0x4, scoped, tag = 'scoped memory for tpu_custom_call.1']
  #allocation3 [shape = 's32[1]{0:T(128)S(6)}', space=smem, size = 0x200, scoped, tag = 'prefetched SMEM operand 0']
  %s0 = inlined_call_operand.<no memory space> [shape: s32[1], index: 0, kind: input, shape index: {}]
  %s1 = inlined_call_operand.hbm [shape: f32[2,4,256], index: 1, kind: input, shape index: {}]
  %s2 = inlined_call_operand.vmem [shape: s32[2,1,256], index: 2, kind: input, shape index: {}]
  %s3 = inlined_call_operand.hbm [shape: f32[1,2,1,256], index: 3, kind: output, shape index: {0}]
  %s4 = inlined_call_operand.hbm [shape: f32[1,2,1,256], index: 4, kind: output, shape index: {1}]
  %5 = xla_tuple %s3, %s4
  %s6 = sld [smem:[#allocation0]]
  $region57: #{tpu_custom_call.1} parent=0
    _
  %s8 = ssub.s32 1, %s6
  %s9 = scalar_select 0, %s8, %s6
  %10 = sst [smem:[#allocation3]] %s0
  $region1: #{tpu_custom_call.1} parent=0
    #allocation4 [shape = 'u8[8192]{0}', space=vmem, size = 0x2000, scoped, tag = 'input window, operand 1']
    #allocation5 [shape = 's32[2]{0}', space=sflag, size = 0x8, scoped, tag = 'scoped memory for tpu_custom_call.1']
    #allocation6 [shape = 's32[2]{0}', space=sflag, size = 0x8, scoped, tag = 'scoped memory for tpu_custom_call.1']
    #allocation7 [shape = 'u8[2048]{0}', space=vmem, size = 0x800, scoped, tag = 'output window, operand 0']
    #allocation8 [shape = 'u8[2048]{0}', space=vmem, size = 0x800, scoped, tag = 'output window, operand 1']
    #allocation9 [shape = 's32[2]{0}', space=sflag, size = 0x8, scoped, tag = 'scoped memory for tpu_custom_call.1']
    %11 = vsyncpa [#allocation5], 0
    %s12 = scalar_lea.sflag [#allocation5], 1
    %13 = vsyncpa %s12, 0
    %14 = vsyncpa [#allocation6], 0
    %s15 = scalar_lea.sflag [#allocation6], 1
    %16 = vsyncpa %s15, 0
    %17 = vsyncpa [#allocation9], 0
    %s18 = scalar_lea.sflag [#allocation9], 1
    %19 = vsyncpa %s18, 0
    loop: start=0, step=1, limit=4
    $region2: #{tpu_custom_call.1} parent=1 // loop_pre_header
      _
    $region3: #{tpu_custom_call.1} parent=1 // loop_header
      %s21 = sphi 0, %s25
      %p22 = scmp.ge.s32.totalorder %s21, 4
      %s28 = sphi 0, %s47
      %s29 = sphi 0, %s43
      %s30 = sphi 0, %s39
      %s31 = sphi 0, %s28
      %s32 = sphi 0, %s29
      %s33 = sphi 0, %s30
      %s34 = sphi 0, %s31
      %s35 = sphi 0, %s32
      %s36 = sphi 0, %s33
      %s54 = sphi 0, %s56
      %s57 = sphi 0, %s54
      %s58 = sphi 0, %s57
      %s74 = sphi 0, %s58
      %s84 = sphi 0, %s86
      %s87 = sphi 0, %s84
      %s88 = sphi 0, %s87
      %s104 = sphi 0, %s88
      %s112 = sphi 0, %s114
      %s115 = sphi 0, %s112
      %s116 = sphi 0, %s115
      %s132 = sphi 0, %s116
      %s140 = sphi 0, %s142
      %s143 = sphi 0, %s140
      %s144 = sphi 0, %s143
      %s160 = sphi 0, %s144
    $region4: #{tpu_custom_call.1} parent=1 // loop_header_branch
      %24 = sbr.rel (%p22) target = $region8
    $region5: #{tpu_custom_call.1} parent=1 // loop_body
      %s26 = ssub.s32 %s21, 1
      %s27 = ssub.s32 %s21, 2
      %s37 = sadd.s32 1, %s30
      %p38 = scmp.ge.s32.totalorder %s37, 1
      %s39 = scalar_select %p38, 0, %s37
      %s40 = sadd.s32 1, %s29
      %s41 = scalar_select %p38, %s40, %s29
      %p42 = scmp.ge.s32.totalorder %s41, 2
      %s43 = scalar_select %p42, 0, %s41
      %s44 = sadd.s32 1, %s28
      %s45 = scalar_select %p42, %s44, %s28
      %p46 = scmp.ge.s32.totalorder %s45, 1
      %s47 = scalar_select %p46, 0, %s45
      %s48 = sadd.s32 %s28, %s30
      %s49 = sadd.s32 %s47, %s39
      %s50 = ssub.s32 %s29, %s43
      %s51 = ssub.s32 %s48, %s49
      %s52 = sor.u32 %s50, %s51
      %p53 = scmp.eq.s32.totalorder %s52, 0
      %s55 = sadd.s32 %s54, 1
      %s56 = scalar_select %p53, %s54, %s55
      %p59 = pneg %p53
      %p60 = scmp.eq.s32.totalorder %s21, 1
      %p61 = por %p59, %p60
      %p62 = scmp.ne.s32.totalorder %s54, %s57
      %p63 = scmp.eq.s32.totalorder %s21, 0
      %p64 = por %p62, %p63
      %p65 = scmp.ne.s32.totalorder %s54, %s57
      %p66 = scmp.eq.s32.totalorder %s26, 1
      %p67 = por %p65, %p66
      %p68 = scmp.ne.s32.totalorder %s57, %s58
      %p69 = scmp.eq.s32.totalorder %s26, 0
      %p70 = por %p68, %p69
      %p71 = scmp.ne.s32.totalorder %s57, %s58
      %p72 = scmp.eq.s32.totalorder %s27, 1
      %p73 = por %p71, %p72
      %p75 = scmp.ne.s32.totalorder %s58, %s74
      %p76 = scmp.eq.s32.totalorder %s27, 0
      %p77 = por %p75, %p76
      %s78 = sadd.s32 %s28, %s30
      %s79 = sadd.s32 %s47, %s39
      %s80 = ssub.s32 %s29, %s43
      %s81 = ssub.s32 %s78, %s79
      %s82 = sor.u32 %s80, %s81
      %p83 = scmp.eq.s32.totalorder %s82, 0
      %s85 = sadd.s32 %s84, 1
      %s86 = scalar_select %p83, %s84, %s85
      %p89 = pneg %p83
      %p90 = scmp.eq.s32.totalorder %s21, 1
      %p91 = por %p89, %p90
      %p92 = scmp.ne.s32.totalorder %s84, %s87
      %p93 = scmp.eq.s32.totalorder %s21, 0
      %p94 = por %p92, %p93
      %p95 = scmp.ne.s32.totalorder %s84, %s87
      %p96 = scmp.eq.s32.totalorder %s26, 1
      %p97 = por %p95, %p96
      %p98 = scmp.ne.s32.totalorder %s87, %s88
      %p99 = scmp.eq.s32.totalorder %s26, 0
      %p100 = por %p98, %p99
      %p101 = scmp.ne.s32.totalorder %s87, %s88
      %p102 = scmp.eq.s32.totalorder %s27, 1
      %p103 = por %p101, %p102
      %p105 = scmp.ne.s32.totalorder %s88, %s104
      %p106 = scmp.eq.s32.totalorder %s27, 0
      %p107 = por %p105, %p106
      %s108 = ssub.s32 %s28, %s47
      %s109 = ssub.s32 %s29, %s43
      %s110 = sor.u32 %s108, %s109
      %p111 = scmp.eq.s32.totalorder %s110, 0
      %s113 = sadd.s32 %s112, 1
      %s114 = scalar_select %p111, %s112, %s113
      %p117 = pneg %p111
      %p118 = scmp.eq.s32.totalorder %s21, 1
      %p119 = por %p117, %p118
      %p120 = scmp.ne.s32.totalorder %s112, %s115
      %p121 = scmp.eq.s32.totalorder %s21, 0
      %p122 = por %p120, %p121
      %p123 = scmp.ne.s32.totalorder %s112, %s115
      %p124 = scmp.eq.s32.totalorder %s26, 1
      %p125 = por %p123, %p124
      %p126 = scmp.ne.s32.totalorder %s115, %s116
      %p127 = scmp.eq.s32.totalorder %s26, 0
      %p128 = por %p126, %p127
      %p129 = scmp.ne.s32.totalorder %s115, %s116
      %p130 = scmp.eq.s32.totalorder %s27, 1
      %p131 = por %p129, %p130
      %p133 = scmp.ne.s32.totalorder %s116, %s132
      %p134 = scmp.eq.s32.totalorder %s27, 0
      %p135 = por %p133, %p134
      %s136 = ssub.s32 %s28, %s47
      %s137 = ssub.s32 %s29, %s43
      %s138 = sor.u32 %s136, %s137
      %p139 = scmp.eq.s32.totalorder %s138, 0
      %s141 = sadd.s32 %s140, 1
      %s142 = scalar_select %p139, %s140, %s141
      %p145 = pneg %p139
      %p146 = scmp.eq.s32.totalorder %s21, 1
      %p147 = por %p145, %p146
      %p148 = scmp.ne.s32.totalorder %s140, %s143
      %p149 = scmp.eq.s32.totalorder %s21, 0
      %p150 = por %p148, %p149
      %p151 = scmp.ne.s32.totalorder %s140, %s143
      %p152 = scmp.eq.s32.totalorder %s26, 1
      %p153 = por %p151, %p152
      %p154 = scmp.ne.s32.totalorder %s143, %s144
      %p155 = scmp.eq.s32.totalorder %s26, 0
      %p156 = por %p154, %p155
      %p157 = scmp.ne.s32.totalorder %s143, %s144
      %p158 = scmp.eq.s32.totalorder %s27, 1
      %p159 = por %p157, %p158
      %p161 = scmp.ne.s32.totalorder %s144, %s160
      %p162 = scmp.eq.s32.totalorder %s27, 0
      %p163 = por %p161, %p162
      %p164 = scmp.le.s32.totalorder 1, %s21
      %p165 = scmp.lt.s32.totalorder %s21, 3
      %p166 = pnand %p164, %p165
      %p167 = pneg %p166
      // Predicated region
      $region9: #{tpu_custom_call.1} parent=5 // pred_check
        _
      $region10: #{tpu_custom_call.1} parent=5 // pred_check_branch
        %169 = sbr.rel (%p166) target = $region12
      $region11: #{tpu_custom_call.1} parent=5 // pred_region
        %s170 = ssub.s32 %s21, 1
      $region12: #{tpu_custom_call.1} parent=5 // pred_fallthru
        _
      %p171 = scmp.lt.s32.totalorder %s21, 2
      // Predicated region
      $region13: #{tpu_custom_call.1} parent=5 // pred_check
        %p172 = pneg %p171
      $region14: #{tpu_custom_call.1} parent=5 // pred_check_branch
        %174 = sbr.rel (%p172) target = $region16
      $region15: #{tpu_custom_call.1} parent=5 // pred_region
        // Predicated region
        $region17: #{tpu_custom_call.1} parent=15 // pred_check
          %p175 = pneg %p64
        $region18: #{tpu_custom_call.1} parent=15 // pred_check_branch
          %177 = sbr.rel (%p175) target = $region20
        $region19: #{tpu_custom_call.1} parent=15 // pred_region
          %s178 = sand.u32 %s54, 1
          %s179 = scalar_lea.sflag [#allocation5], %s178
          %s180 = sand.u32 %s54, 1
          %s181 = smul.addr %s180, 8
          %s182 = scalar_lea.vmem [#allocation4], %s181
          %s183 = sadd.s32 %s28, %s30
          %s184 = smul.u32 2, %s183
          %s186 = ssub.s32 128, 128
          %187 = vsyncadd %s179, %s186
          %s188 = smul.addr %s29, 2
          %s189 = sadd.s32 %s184, %s188
          %s190 = smul.addr %s189, 64
          %s191 = scalar_lea.hbm %s1, %s190
          %s193 = sshll.u32 %s182, 4
          %s194 = int_to_ptr.vmem [resolvable:$true] %s193
          %196 = dma.hbm_to_vmem [thread:$0]  %s191, 128, %s194, %s179
        $region20: #{tpu_custom_call.1} parent=15 // pred_fallthru
          _
        // Predicated region
        $region21: #{tpu_custom_call.1} parent=15 // pred_check
          %p197 = pneg %p94
        $region22: #{tpu_custom_call.1} parent=15 // pred_check_branch
          %199 = sbr.rel (%p197) target = $region24
        $region23: #{tpu_custom_call.1} parent=15 // pred_region
          %s200 = sadd.s32 %s28, %s30
          %s201 = smul.u32 2, %s200
          %p202 = scmp.lt.s32.totalorder %s29, 1
          %s203 = scalar_select %p202, %s29, 1
          %p204 = scmp.lt.s32.totalorder %s201, 1
          %s205 = scalar_select %p204, %s201, 1
          %s206 = smul.addr %s203, 2
          %s207 = sadd.s32 %s205, %s206
          %s208 = scalar_lea.vmem %s2, %s207
          %s209 = sadd.s32 %s28, %s30
          %s210 = smul.u32 2, %s209
        $region24: #{tpu_custom_call.1} parent=15 // pred_fallthru
          _
      $region16: #{tpu_custom_call.1} parent=5 // pred_fallthru
        _
      %p211 = scmp.le.s32.totalorder 1, %s21
      %p212 = scmp.lt.s32.totalorder %s21, 3
      %p213 = pnand %p211, %p212
      %p214 = pneg %p213
      // Predicated region
      $region25: #{tpu_custom_call.1} parent=5 // pred_check
        _
      $region26: #{tpu_custom_call.1} parent=5 // pred_check_branch
        %216 = sbr.rel (%p213) target = $region28
      $region27: #{tpu_custom_call.1} parent=5 // pred_region
        %s217 = ssub.s32 %s21, 1
        %s218 = sand.u32 %s57, 1
        %s219 = scalar_lea.sflag [#allocation5], %s218
        %s220 = sand.u32 %s57, 1
        %s221 = smul.addr %s220, 8
        %s222 = scalar_lea.vmem [#allocation4], %s221
        // Predicated region
        $region29: #{tpu_custom_call.1} parent=27 // pred_check
          %p223 = pneg %p70
        $region30: #{tpu_custom_call.1} parent=27 // pred_check_branch
          %225 = sbr.rel (%p223) target = $region32
        $region31: #{tpu_custom_call.1} parent=27 // pred_region
          %226 = dma.done %s219, 128
        $region32: #{tpu_custom_call.1} parent=27 // pred_fallthru
          _
        %s227 = sand.u32 %s57, 1
        %s228 = scalar_lea.sflag [#allocation5], %s227
        %s229 = sand.u32 %s57, 1
        %s230 = smul.addr %s229, 8
        %s231 = scalar_lea.vmem [#allocation4], %s230
        %p232 = pneg %p70
        %p233 = pneg %p67
        %s234 = sadd.s32 %s31, %s33
        %s235 = smul.u32 2, %s234
        %p236 = scmp.lt.s32.totalorder %s32, 1
        %s237 = scalar_select %p236, %s32, 1
        %p238 = scmp.lt.s32.totalorder %s235, 1
        %s239 = scalar_select %p238, %s235, 1
        %s240 = smul.addr %s237, 2
        %s241 = sadd.s32 %s239, %s240
        %s242 = scalar_lea.vmem %s2, %s241
        %p243 = pneg %p100
        %p244 = pneg %p97
        %p245 = pneg %p128
        %p246 = pneg %p125
        %s247 = sand.u32 %s115, 1
        %s248 = scalar_lea.sflag [#allocation6], %s247
        %s249 = sand.u32 %s115, 1
        %s250 = smul.addr %s249, 2
        %s251 = scalar_lea.vmem [#allocation7], %s250
        %p252 = pneg %p156
        %p253 = pneg %p153
        %s254 = sand.u32 %s143, 1
        %s255 = scalar_lea.sflag [#allocation9], %s254
        %s256 = sand.u32 %s143, 1
        %s257 = smul.addr %s256, 2
        %s258 = scalar_lea.vmem [#allocation8], %s257
        %s259 = sadd.s32 %s31, %s33
        %s260 = smul.u32 2, %s259
        %s261 = sadd.s32 %s31, %s33
        %s262 = smul.u32 2, %s261
        %p263 = scmp.lt.s32.totalorder %s32, 1
        %s264 = scalar_select %p263, %s32, 1
        %p265 = scmp.lt.s32.totalorder %s262, 1
        %s266 = scalar_select %p265, %s262, 1
        %s267 = smul.addr %s264, 2
        %s268 = sadd.s32 %s266, %s267
        %s269 = scalar_lea.vmem %s2, %s268
        %s270 = sadd.s32 %s31, %s33
        %s271 = smul.u32 2, %s270
        %p272 = scmp.eq.s32.totalorder %s33, 0
        // Predicated region
        $region33: #{tpu_custom_call.1} parent=27 // pred_check
          %p273 = pneg %p272
        $region34: #{tpu_custom_call.1} parent=27 // pred_check_branch
          %275 = sbr.rel (%p273) target = $region36
        $region35: #{tpu_custom_call.1} parent=27 // pred_region
          %v276 = vlaneseq
          %vm277 = vcmp.ge.s32.totalorder %v276, 0
          %vm278 = vcmp.lt.s32.totalorder %v276, 256
          %vm279 = vmand %vm277, %vm278
          %280 = vst.msk [vmem:[%s251] sm:$0x3] %vm279, 0.0
          %281 = vst.msk [vmem:[%s258] sm:$0x3] %vm279, 0.0
        $region36: #{tpu_custom_call.1} parent=27 // pred_fallthru
          _
        %v282 = vld [vmem:[%s222] sm:$0xff]
        %v283 = vld [vmem:[%s269] sm:$0x3]
        %vm284 = vcmp.eq.s32.totalorder %v283, 255
        %s285 = sld [smem:[#allocation3]]
        %v286 = vstv %s285
        %v287 = vsel %vm284, %v286, %v283
        %v289 = vcombine.high %v282, %v282
        %vm291 = vcmask 1043456
        %v292 = vsel %vm291, %v282, -inf
        %v293 = vrot.slane %v292, 4
        %v294 = vmax.f32 %v292, %v293
        %v295 = vrot.slane %v294, 2
        %v296 = vmax.f32 %v294, %v295
        %v297 = vrot.slane %v296, 1
        %v298 = vmax.f32 %v296, %v297
        %v299 = vsel %vm291, %v289, -inf
        %v300 = vrot.slane %v299, 4
        %v301 = vmax.f32 %v299, %v300
        %v302 = vrot.slane %v301, 2
        %v303 = vmax.f32 %v301, %v302
        %v304 = vrot.slane %v303, 1
        %v305 = vmax.f32 %v303, %v304
        %v308 = vcombine.low %v298, %v305
        %v310 = vsub.f32 %v282, %v308
        %v311 = vmul.f32 %v310, 1.442695
        %v312 = vpow.pop %v311
        %v314 = vcombine.high %v312, %v312
        %v316 = vsel %vm291, %v312, 0.0
        %v317 = vrot.slane %v316, 4
        %v318 = vadd.f32 %v316, %v317
        %v319 = vrot.slane %v318, 2
        %v320 = vadd.f32 %v318, %v319
        %v321 = vrot.slane %v320, 1
        %v322 = vadd.f32 %v320, %v321
        %v323 = vsel %vm291, %v314, 0.0
        %v324 = vrot.slane %v323, 4
        %v325 = vadd.f32 %v323, %v324
        %v326 = vrot.slane %v325, 2
        %v327 = vadd.f32 %v325, %v326
        %v328 = vrot.slane %v327, 1
        %v329 = vadd.f32 %v327, %v328
        %v330 = vlaneseq
        %v331 = vshrl.u32 %v330, 7
        %v332 = vlaneseq
        %v333 = vshrl.u32 %v332, 7
        %v334 = vsub.s32 0, %v333
        %v335 = vrot.slane %v287, %v334
        %v336 = vlaneseq
        %v337 = vshrl.u32 %v336, 7
        %v338 = vsub.s32 1, %v337
        %v339 = vrot.slane %v287, %v338
        %vm340 = vcmp.eq.s32.totalorder %v331, %v335
        %vm341 = vcmp.eq.s32.totalorder %v331, %v339
        %v342 = vsel %vm340, %v312, 0.0
        %v343 = vsel %vm341, %v314, 0.0
        %v344 = vsel %vm291, %v342, 0.0
        %v345 = vrot.slane %v344, 4
        %v346 = vadd.f32 %v344, %v345
        %v347 = vrot.slane %v346, 2
        %v348 = vadd.f32 %v346, %v347
        %v349 = vrot.slane %v348, 1
        %v350 = vadd.f32 %v348, %v349
        %v351 = vsel %vm291, %v343, 0.0
        %v352 = vrot.slane %v351, 4
        %v353 = vadd.f32 %v351, %v352
        %v354 = vrot.slane %v353, 2
        %v355 = vadd.f32 %v353, %v354
        %v356 = vrot.slane %v355, 1
        %v357 = vadd.f32 %v355, %v356
        %v358 = vrcp.pop %v322
        %v359 = vrcp.pop %v329
        %v360 = vmul.f32 %v322, %v358
        %v361 = vmul.f32 %v329, %v359
        %v362 = vsub.f32 2.0, %v360
        %v363 = vsub.f32 2.0, %v361
        %v364 = vmul.f32 %v358, %v362
        %v365 = vmul.f32 %v359, %v363
        %v366 = vmul.f32 %v350, %v364
        %v367 = vmul.f32 %v357, %v365
        %v368 = vmax.f32 %v366, 1e-07
        %v369 = vmax.f32 %v367, 1e-07
        %v370 = vmin.f32 %v368, 1.0
        %v371 = vmin.f32 %v369, 1.0
        %v372 = vsub.f32 6.0, %v370
        %v373 = vsub.f32 6.0, %v371
        %v374 = vrsqrt.pop %v372
        %v375 = vmul.f32 %v372, %v374
        %vm376 = vcmp.eq.f32.partialorder %v372, inf
        %v377 = vsel %vm376, %v372, %v375
        %vm378 = vcmp.eq.f32.partialorder %v372, 0.0
        %v379 = vand.u32 %v372, 2147483648
        %v380 = vsel %vm378, %v379, %v377
        %v381 = vrsqrt.pop %v373
        %v382 = vmul.f32 %v373, %v381
        %vm383 = vcmp.eq.f32.partialorder %v373, inf
        %v384 = vsel %vm383, %v373, %v382
        %vm385 = vcmp.eq.f32.partialorder %v373, 0.0
        %v386 = vand.u32 %v373, 2147483648
        %v387 = vsel %vm385, %v386, %v384
        %v388 = vmul.f32 %v372, %v380
        %v389 = vmul.f32 %v373, %v387
        %v390 = vsub.f32 %v388, 11.18034
        %v391 = vsub.f32 %v389, 11.18034
        %v392 = vmul.f32 %v390, 0.6666667
        %v393 = vmul.f32 %v391, 0.6666667
        %v394 = vld [vmem:[%s251] sm:$0x3]
        %v397 = vcombine.low %v366, %v367
        %v399 = vunpack.c.l.s4 1966171168
        %v400 = vunpack.c.0.s8 %v399
        %v401 = vlaneseq
        %v402 = vshrl.u32 %v401, 7
        %v403 = vsub.s32 %v400, %v402
        %v404 = vrot.slane %v397, %v403
        %v406 = vunpack.c.l.s4 1966171168
        %v407 = vunpack.c.0.s8 %v406
        %v408 = vlaneseq
        %v409 = vshrl.u32 %v408, 7
        %v410 = vsub.s32 %v407, %v409
        %v411 = vrot.slane %v404, %v410
        %v413 = vadd.f32 %v394, %v411
        %v414 = vlaneseq
        %vm415 = vcmp.ge.s32.totalorder %v414, 0
        %vm416 = vcmp.lt.s32.totalorder %v414, 256
        %vm417 = vmand %vm415, %vm416
        %418 = vst.msk [vmem:[%s251] sm:$0x3] %vm417, %v413
        %v419 = vld [vmem:[%s258] sm:$0x3]
        %v422 = vcombine.low %v392, %v393
        %v424 = vunpack.c.l.s4 1966171168
        %v425 = vunpack.c.0.s8 %v424
        %v426 = vlaneseq
        %v427 = vshrl.u32 %v426, 7
        %v428 = vsub.s32 %v425, %v427
        %v429 = vrot.slane %v422, %v428
        %v431 = vunpack.c.l.s4 1966171168
        %v432 = vunpack.c.0.s8 %v431
        %v433 = vlaneseq
        %v434 = vshrl.u32 %v433, 7
        %v435 = vsub.s32 %v432, %v434
        %v436 = vrot.slane %v429, %v435
        %v438 = vadd.f32 %v419, %v436
        %439 = vst.msk [vmem:[%s258] sm:$0x3] %vm417, %v438
        %s440 = sand.u32 %s115, 1
        %s441 = scalar_lea.sflag [#allocation6], %s440
        %s442 = sand.u32 %s115, 1
        %s443 = smul.addr %s442, 2
        %s444 = scalar_lea.vmem [#allocation7], %s443
        %s445 = sand.u32 %s143, 1
        %s446 = scalar_lea.sflag [#allocation9], %s445
        %s447 = sand.u32 %s143, 1
        %s448 = smul.addr %s447, 2
        %s449 = scalar_lea.vmem [#allocation8], %s448
        // Predicated region
        $region37: #{tpu_custom_call.1} parent=27 // pred_check
          %p450 = pneg %p125
        $region38: #{tpu_custom_call.1} parent=27 // pred_check_branch
          %452 = sbr.rel (%p450) target = $region40
        $region39: #{tpu_custom_call.1} parent=27 // pred_region
          %s454 = ssub.s32 32, 32
          %455 = vsyncadd %s441, %s454
          %s456 = smul.addr %s32, 2
          %s457 = smul.addr %s31, 4
          %s458 = sadd.s32 %s456, %s457
          %s459 = smul.addr %s458, 16
          %s460 = scalar_lea.hbm %s3, %s459
          %s462 = sshll.u32 %s444, 4
          %s463 = int_to_ptr.vmem [resolvable:$true] %s462
          %465 = dma.vmem_to_hbm [thread:$0]  %s463, 32, %s460, %s441
        $region40: #{tpu_custom_call.1} parent=27 // pred_fallthru
          _
        // Predicated region
        $region41: #{tpu_custom_call.1} parent=27 // pred_check
          %p466 = pneg %p153
        $region42: #{tpu_custom_call.1} parent=27 // pred_check_branch
          %468 = sbr.rel (%p466) target = $region44
        $region43: #{tpu_custom_call.1} parent=27 // pred_region
          %s470 = ssub.s32 32, 32
          %471 = vsyncadd %s446, %s470
          %s472 = smul.addr %s32, 2
          %s473 = smul.addr %s31, 4
          %s474 = sadd.s32 %s472, %s473
          %s475 = smul.addr %s474, 16
          %s476 = scalar_lea.hbm %s4, %s475
          %s478 = sshll.u32 %s449, 4
          %s479 = int_to_ptr.vmem [resolvable:$true] %s478
          %481 = dma.vmem_to_hbm [thread:$0]  %s479, 32, %s476, %s446
        $region44: #{tpu_custom_call.1} parent=27 // pred_fallthru
          _
      $region28: #{tpu_custom_call.1} parent=5 // pred_fallthru
        _
      %p482 = scmp.le.s32.totalorder 2, %s21
      // Predicated region
      $region45: #{tpu_custom_call.1} parent=5 // pred_check
        %p483 = pneg %p482
      $region46: #{tpu_custom_call.1} parent=5 // pred_check_branch
        %485 = sbr.rel (%p483) target = $region48
      $region47: #{tpu_custom_call.1} parent=5 // pred_region
        %s486 = ssub.s32 %s21, 2
        // Predicated region
        $region49: #{tpu_custom_call.1} parent=47 // pred_check
          %p487 = pneg %p131
        $region50: #{tpu_custom_call.1} parent=47 // pred_check_branch
          %489 = sbr.rel (%p487) target = $region52
        $region51: #{tpu_custom_call.1} parent=47 // pred_region
          %s490 = sand.u32 %s116, 1
          %s491 = scalar_lea.sflag [#allocation6], %s490
          %s492 = sand.u32 %s116, 1
          %s493 = smul.addr %s492, 2
          %s494 = scalar_lea.vmem [#allocation7], %s493
          %495 = dma.done %s491, 32
        $region52: #{tpu_custom_call.1} parent=47 // pred_fallthru
          _
        // Predicated region
        $region53: #{tpu_custom_call.1} parent=47 // pred_check
          %p496 = pneg %p159
        $region54: #{tpu_custom_call.1} parent=47 // pred_check_branch
          %498 = sbr.rel (%p496) target = $region56
        $region55: #{tpu_custom_call.1} parent=47 // pred_region
          %s499 = sand.u32 %s144, 1
          %s500 = scalar_lea.sflag [#allocation9], %s499
          %s501 = sand.u32 %s144, 1
          %s502 = smul.addr %s501, 2
          %s503 = scalar_lea.vmem [#allocation8], %s502
          %504 = dma.done %s500, 32
        $region56: #{tpu_custom_call.1} parent=47 // pred_fallthru
          _
      $region48: #{tpu_custom_call.1} parent=5 // pred_fallthru
        _
    $region6: #{tpu_custom_call.1} parent=1 // loop_footer
      %s25 = sadd.s32 1, %s21
    $region7: #{tpu_custom_call.1} parent=1 // loop_footer_branch
      %20 = sbr.rel target = $region3
    $region8: #{tpu_custom_call.1} parent=1 // loop_exit
      _
    %505 = vsyncpa [#allocation5], 1
    %s506 = scalar_lea.sflag [#allocation5], 1
    %507 = vsyncpa %s506, 1
    %508 = vsyncpa [#allocation6], 1
    %s509 = scalar_lea.sflag [#allocation6], 1
    %510 = vsyncpa %s509, 1
    %511 = vsyncpa [#allocation9], 1
    %s512 = scalar_lea.sflag [#allocation9], 1
    %513 = vsyncpa %s512, 1

</llo_original>
